<compile_context>
chip_gen: v6e
topology: v6e:2x2x1
jax: 0.10.0
libtpu: 0.0.40
codegen_flags: <defaults>
</compile_context>

<pallas_src>
import functools
import math

import jax
import jax.numpy as jnp
from jax.experimental import pallas as pl
from jax.experimental.pallas import tpu as pltpu


def _round_up(x, m):
    return ((x + m - 1) // m) * m


def _pad2d(a, rows, cols):
    return jnp.pad(a, ((0, rows - a.shape[0]), (0, cols - a.shape[1])))


def _vmem_limit(streamed, resident=(), scratch=0, headroom=8 << 20, cap=48 << 20):
    # Streamed blocks are double-buffered by the pipeline; resident (index-constant)
    # blocks and scratch are single copies.  Cap below v7x's 64 MiB physical VMEM.
    need = 2 * sum(streamed) + sum(resident) + scratch + headroom
    return int(min(cap, need))


# ---------------------------------------------------------------------------
# One-shot linear1: xw = x @ W1^T + b1  (grid over row tiles only, bf16 output).
def _linear1_kernel(x_ref, w1t_ref, b1_ref, xw_ref):
    xw = jnp.dot(x_ref[...], w1t_ref[...], preferred_element_type=jnp.float32)
    xw_ref[...] = (xw + b1_ref[...]).astype(xw_ref.dtype)


# ---------------------------------------------------------------------------
# Step 1: h1 = dropout(relu(adj @ xw))
# grid = (row tile i, contraction tile k); k is the reduction axis (last).
def _propagate1_kernel(adj_ref, xw_ref, mask_ref, h1_ref, acc_ref):
    k = pl.program_id(1)

    @pl.when(k == 0)
    def _():
        acc_ref[...] = jnp.zeros_like(acc_ref)

    # bf16 x bf16 on the MXU, f32 accumulation in VMEM scratch.
    acc_ref[...] += jnp.dot(adj_ref[...], xw_ref[...],
                            preferred_element_type=jnp.float32)

    @pl.when(k == pl.num_programs(1) - 1)
    def _():
        h = jnp.maximum(acc_ref[...], 0.0)             # relu
        h = h * mask_ref[...].astype(jnp.float32)      # dropout ({0, 1/(1-p)} mask)
        h1_ref[...] = h.astype(h1_ref.dtype)


# ---------------------------------------------------------------------------
# Step 2: out = softmax(relu((adj @ h1) @ W2^T + b2), axis=1)
def _propagate2_kernel(out_feats, use_fast_recip,
                       adj_ref, h1_ref, w2t_ref, b2_ref, out_ref, acc_ref):
    k = pl.program_id(1)

    @pl.when(k == 0)
    def _():
        acc_ref[...] = jnp.zeros_like(acc_ref)

    acc_ref[...] += jnp.dot(adj_ref[...], h1_ref[...],
                            preferred_element_type=jnp.float32)

    @pl.when(k == pl.num_programs(1) - 1)
    def _():
        # linear2 (bf16 MXU) + relu + masked softmax over the padded class axis.
        y = jnp.dot(acc_ref[...].astype(jnp.bfloat16), w2t_ref[...],
                    preferred_element_type=jnp.float32)
        y = jnp.maximum(y + b2_ref[...], 0.0)
        col = jax.lax.broadcasted_iota(jnp.int32, y.shape, 1)
        valid = col < out_feats
        m = jnp.max(jnp.where(valid, y, jnp.float32(-1e30)), axis=1, keepdims=True)
        e = jnp.where(valid, jnp.exp(y - m), 0.0)
        s = jnp.sum(e, axis=1, keepdims=True)
        if use_fast_recip:
            inv = pl.reciprocal(s, approx=True)   # EUP slot -> effectively free
        else:
            inv = 1.0 / s                         # interpret/CPU-safe path
        out_ref[...] = (e * inv).astype(out_ref.dtype)


# ---------------------------------------------------------------------------
def fedgcn_forward(x, adj, w1, b1, w2, b2, *, dropout_mask=None, dropout_p=0.5,
                   dropout_seed=0, training=True, tm=512, tk=512):
    """FedGCN forward. x: [N, in], adj: [N, N], w1: [h, in], w2: [out, h]."""
    n, in_feats = x.shape
    h_feats = w1.shape[0]
    out_feats = w2.shape[0]

    in_p = _round_up(in_feats, 128)
    h_p = _round_up(h_feats, 128)
    out_p = _round_up(out_feats, 128)

    # Tile choice: tm ~ 512 rows, tk ~ 512 contraction depth (>= 256 fills the
    # v6e/v7x MXU); clamp for small graphs, keep multiples of 128 for lane alignment.
    n_min = _round_up(n, 128)
    tm = max(128, min(_round_up(tm, 128), n_min))
    tk = max(128, min(_round_up(tk, 128), n_min))
    n_p = _round_up(n, math.lcm(tm, tk))

    # Dropout mask, pre-scaled by 1/(1-p), generated host-side and stored bf16
    # (exact for p=0.5).
    # TODO(synk): on real HW this could be generated in the step-1 epilogue with
    # pltpu.prng_seed / prng_random_bits keyed on pl.program_id(0), dropping the
    # mask input stream entirely.
    if not training or dropout_p == 0.0:
        mask = jnp.ones((n, h_feats), jnp.bfloat16)
    elif dropout_mask is not None:
        mask = dropout_mask.astype(jnp.bfloat16)
    else:
        keep = jax.random.bernoulli(jax.random.PRNGKey(dropout_seed),
                                    1.0 - dropout_p, (n, h_feats))
        mask = (keep.astype(jnp.float32) / (1.0 - dropout_p)).astype(jnp.bfloat16)

    # Cast MXU-facing operands to bf16 *before* padding (no padded f32 n^2 copy).
    adj_pd = _pad2d(adj.astype(jnp.bfloat16), n_p, n_p)
    x_pd = _pad2d(x.astype(jnp.bfloat16), n_p, in_p)
    w1t_pd = _pad2d(w1.T.astype(jnp.bfloat16), in_p, h_p)
    b1_pd = _pad2d(b1.reshape(1, -1).astype(jnp.float32), 1, h_p)
    w2t_pd = _pad2d(w2.T.astype(jnp.bfloat16), h_p, out_p)
    b2_pd = _pad2d(b2.reshape(1, -1).astype(jnp.float32), 1, out_p)
    mask_pd = _pad2d(mask, n_p, h_p)

    row_grid = n_p // tm
    k_grid = n_p // tk
    dim_sem = ("parallel", "arbitrary")           # rows across TCs, K is reduction
    use_fast_recip = jax.default_backend() == "tpu"

    # ---- linear1 (hoisted, one-shot): xw = x @ W1^T + b1 -> bf16 [n_p, h_p] ----
    vmem_l1 = _vmem_limit(streamed=[tm * in_p * 2, tm * h_p * 2],
                          resident=[in_p * h_p * 2, h_p * 4])
    xw = pl.pallas_call(
        _linear1_kernel,
        out_shape=jax.ShapeDtypeStruct((n_p, h_p), jnp.bfloat16),
        grid_spec=pltpu.PrefetchScalarGridSpec(
            num_scalar_prefetch=0,
            grid=(row_grid,),
            in_specs=[
                pl.BlockSpec((tm, in_p), lambda i: (i, 0)),    # x row tile
                pl.BlockSpec((in_p, h_p), lambda i: (0, 0)),   # W1^T (resident)
                pl.BlockSpec((1, h_p), lambda i: (0, 0)),      # b1
            ],
            out_specs=pl.BlockSpec((tm, h_p), lambda i: (i, 0)),
        ),
        compiler_params=pltpu.CompilerParams(
            dimension_semantics=("parallel",), vmem_limit_bytes=vmem_l1),
    )(x_pd, w1t_pd, b1_pd)

    # ---- step 1: h1 = dropout(relu(adj @ xw)) ----
    vmem1 = _vmem_limit(
        streamed=[tm * tk * 2, tk * h_p * 2, tm * h_p * 2, tm * h_p * 2],
        scratch=tm * h_p * 4)
    h1 = pl.pallas_call(
        _propagate1_kernel,
        out_shape=jax.ShapeDtypeStruct((n_p, h_p), jnp.bfloat16),
        grid_spec=pltpu.PrefetchScalarGridSpec(
            num_scalar_prefetch=0,
            grid=(row_grid, k_grid),
            in_specs=[
                pl.BlockSpec((tm, tk), lambda i, k: (i, k)),    # adj tile
                pl.BlockSpec((tk, h_p), lambda i, k: (k, 0)),   # xw slab (bf16)
                pl.BlockSpec((tm, h_p), lambda i, k: (i, 0)),   # dropout mask (bf16)
            ],
            out_specs=pl.BlockSpec((tm, h_p), lambda i, k: (i, 0)),
            scratch_shapes=[pltpu.VMEM((tm, h_p), jnp.float32)],
        ),
        compiler_params=pltpu.CompilerParams(
            dimension_semantics=dim_sem, vmem_limit_bytes=vmem1),
    )(adj_pd, xw, mask_pd)

    # ---- step 2: out = softmax(relu(linear2(adj @ h1))) ----
    vmem2 = _vmem_limit(
        streamed=[tm * tk * 2, tk * h_p * 2, tm * out_p * 4],
        resident=[h_p * out_p * 2, out_p * 4],
        scratch=tm * h_p * 4)
    out_full = pl.pallas_call(
        functools.partial(_propagate2_kernel, out_feats, use_fast_recip),
        out_shape=jax.ShapeDtypeStruct((n_p, out_p), jnp.float32),
        grid_spec=pltpu.PrefetchScalarGridSpec(
            num_scalar_prefetch=0,
            grid=(row_grid, k_grid),
            in_specs=[
                pl.BlockSpec((tm, tk), lambda i, k: (i, k)),    # adj tile
                pl.BlockSpec((tk, h_p), lambda i, k: (k, 0)),   # h1 slab (bf16)
                pl.BlockSpec((h_p, out_p), lambda i, k: (0, 0)),  # W2^T (resident)
                pl.BlockSpec((1, out_p), lambda i, k: (0, 0)),    # b2
            ],
            out_specs=pl.BlockSpec((tm, out_p), lambda i, k: (i, 0)),
            scratch_shapes=[pltpu.VMEM((tm, h_p), jnp.float32)],
        ),
        compiler_params=pltpu.CompilerParams(
            dimension_semantics=dim_sem, vmem_limit_bytes=vmem2),
    )(adj_pd, h1, w2t_pd, b2_pd)

    return out_full[:n, :out_feats]


def init_params(key, in_feats, h_feats, out_feats):
    """kaiming_normal_ on 2D weights, default nn.Linear uniform init on biases."""
    k1, k2, k3, k4 = jax.random.split(key, 4)
    w1 = jax.random.normal(k1, (h_feats, in_feats), jnp.float32) * math.sqrt(2.0 / in_feats)
    w2 = jax.random.normal(k2, (out_feats, h_feats), jnp.float32) * math.sqrt(2.0 / h_feats)
    b1 = jax.random.uniform(k3, (h_feats,), jnp.float32,
                            -1.0 / math.sqrt(in_feats), 1.0 / math.sqrt(in_feats))
    b2 = jax.random.uniform(k4, (out_feats,), jnp.float32,
                            -1.0 / math.sqrt(h_feats), 1.0 / math.sqrt(h_feats))
    return w1, b1, w2, b2


if __name__ == "__main__":
    # Small synthetic graph.  N=1000 with tm=tk=512 exercises padding (1000 -> 1024),
    # a 2x2 grid (multi-tile reduction + 2 parallel row tiles for v7x megacore).
    N, IN_FEATS, H_FEATS, OUT_FEATS = 1000, 32, 64, 16

    key = jax.random.PRNGKey(0)
    kx, kadj, kparams, kdrop = jax.random.split(key, 4)

    x = jax.random.normal(kx, (N, IN_FEATS), jnp.float32)

    # Symmetric row-normalized adjacency with self-loops (typical GCN input).
    a = (jax.random.uniform(kadj, (N, N)) < 0.01).astype(jnp.float32)
    a = jnp.maximum(a, a.T) + jnp.eye(N, dtype=jnp.float32)
    adj = a / jnp.sum(a, axis=1, keepdims=True)

    w1, b1, w2, b2 = init_params(kparams, IN_FEATS, H_FEATS, OUT_FEATS)

    # Pre-scaled dropout mask (p=0.5) shared between kernel and reference.
    mask = jax.random.bernoulli(kdrop, 0.5, (N, H_FEATS)).astype(jnp.float32) * 2.0

    out = fedgcn_forward(x, adj, w1, b1, w2, b2, dropout_mask=mask)
    out = jax.block_until_ready(out)

    # Pure-JAX f32 reference with the same dropout mask.
    h_ref = jnp.maximum(adj @ (x @ w1.T + b1), 0.0) * mask
    y_ref = jnp.maximum((adj @ h_ref) @ w2.T + b2, 0.0)
    ref = jax.nn.softmax(y_ref, axis=1)

    assert out.shape == (N, OUT_FEATS)
    assert bool(jnp.all(jnp.isfinite(out)))
    assert bool(jnp.allclose(jnp.sum(out, axis=1), 1.0, atol=1e-2))
    err = float(jnp.max(jnp.abs(out - ref)))
    assert err < 2.5e-2, f"max abs error vs reference: {err}"

    print("KERNEL_OK")
</pallas_src>

<mosaic_0001>
module attributes {stable_mosaic.version = 11 : i64} {
  func.func @_linear1_kernel(%arg0: i32, %arg1: memref<512x128xbf16, #tpu.memory_space<vmem>>, %arg2: memref<128x128xbf16, #tpu.memory_space<vmem>>, %arg3: memref<1x128xf32, #tpu.memory_space<vmem>>, %arg4: memref<512x128xbf16, #tpu.memory_space<vmem>>) attributes {dimension_semantics = [#tpu.dimension_semantics<parallel>], iteration_bounds = array<i64: 2>, scalar_prefetch = 0 : i64, scratch_operands = 0 : i64, tpu.core_type = #tpu.core_type<tc>, window_params = [{transform_indices = @transform_0, window_bounds = array<i64: 512, 128>}, {pipeline_mode = #tpu.pipeline_mode<synchronous>, transform_indices = @transform_1, window_bounds = array<i64: 128, 128>}, {pipeline_mode = #tpu.pipeline_mode<synchronous>, transform_indices = @transform_2, window_bounds = array<i64: 1, 128>}, {transform_indices = @transform_3, window_bounds = array<i64: 512, 128>}]} {
    %c0 = arith.constant 0 : index
    %c0_0 = arith.constant 0 : index
    %0 = vector.load %arg1[%c0, %c0_0] : memref<512x128xbf16, #tpu.memory_space<vmem>>, vector<512x128xbf16>
    %c0_1 = arith.constant 0 : index
    %c0_2 = arith.constant 0 : index
    %1 = vector.load %arg2[%c0_1, %c0_2] : memref<128x128xbf16, #tpu.memory_space<vmem>>, vector<128x128xbf16>
    %cst = arith.constant dense<0.000000e+00> : vector<512x128xf32>
    %2 = tpu.matmul %0, %1, %cst {dimension_numbers = #tpu.dot_dimension_numbers<[1], [0], [0], [1], [0, 0, 1, 1], [], []>} : vector<512x128xbf16>, vector<128x128xbf16>, vector<512x128xf32> -> vector<512x128xf32>
    %c0_3 = arith.constant 0 : index
    %c0_4 = arith.constant 0 : index
    %3 = vector.load %arg3[%c0_3, %c0_4] : memref<1x128xf32, #tpu.memory_space<vmem>>, vector<1x128xf32>
    %4 = vector.broadcast %3 : vector<1x128xf32> to vector<512x128xf32>
    %5 = arith.addf %2, %4 : vector<512x128xf32>
    %6 = arith.truncf %5 : vector<512x128xf32> to vector<512x128xbf16>
    %c0_5 = arith.constant 0 : index
    %c0_6 = arith.constant 0 : index
    %7 = vector.load %arg4[%c0_5, %c0_6] : memref<512x128xbf16, #tpu.memory_space<vmem>>, vector<512x128xbf16>
    tpu.vector_store %arg4[%c0_5, %c0_6], %6 {strides = array<i32>} : memref<512x128xbf16, #tpu.memory_space<vmem>>, vector<512x128xbf16>,
    return
  }
  func.func @transform_0(%arg0: i32) -> (i32, i32) {
    %c0_i32 = arith.constant 0 : i32
    %c0_i32_0 = arith.constant 0 : i32
    return %arg0, %c0_i32 : i32, i32
  }
  func.func @transform_1(%arg0: i32) -> (i32, i32) {
    %c0_i32 = arith.constant 0 : i32
    %c0_i32_0 = arith.constant 0 : i32
    %c0_i32_1 = arith.constant 0 : i32
    return %c0_i32, %c0_i32_0 : i32, i32
  }
  func.func @transform_2(%arg0: i32) -> (i32, i32) {
    %c0_i32 = arith.constant 0 : i32
    %c0_i32_0 = arith.constant 0 : i32
    %c0_i32_1 = arith.constant 0 : i32
    return %c0_i32, %c0_i32_0 : i32, i32
  }
  func.func @transform_3(%arg0: i32) -> (i32, i32) {
    %c0_i32 = arith.constant 0 : i32
    %c0_i32_0 = arith.constant 0 : i32
    return %arg0, %c0_i32 : i32, i32
  }
}

</mosaic_0001>

<llo_original>
// kernel: tpu_custom_call.1
$region0: #{tpu_custom_call.1}
  #allocation0 [shape = 'u32[]', space=smem, size = 0x4, offset = 0x4, fixed_abs, tag = 'smem constant byte address 0x4 - core index']
  #allocation1 [shape = 'u32[144,128]{1,0:T(1,128)}', space=vmem, size = 0x12000, scoped, tag = 'internal scratch']
  %s0 = inlined_call_operand.hbm [shape: bf16[1024,128], index: 0, kind: input, shape index: {}]
  %s1 = inlined_call_operand.hbm [shape: bf16[128,128], index: 1, kind: input, shape index: {}]
  %s2 = inlined_call_operand.vmem [shape: f32[1,128], index: 2, kind: input, shape index: {}]
  %s3 = inlined_call_operand.hbm [shape: bf16[1024,128], index: 3, kind: output, shape index: {}]
  %s4 = sld [smem:[#allocation0]]
  $region53: #{tpu_custom_call.1} parent=0
    _
  %s6 = ssub.s32 1, %s4
  %s7 = scalar_select 0, %s6, %s4
  $region1: #{tpu_custom_call.1} parent=0
    #allocation2 [shape = 'u8[262144]{0}', space=vmem, size = 0x40000, scoped, tag = 'input window, operand 0']
    #allocation3 [shape = 's32[2]{0}', space=sflag, size = 0x8, scoped, tag = 'scoped memory for tpu_custom_call.1']
    #allocation4 [shape = 's32[2]{0}', space=sflag, size = 0x8, scoped, tag = 'scoped memory for tpu_custom_call.1']
    #allocation5 [shape = 'u8[32768]{0}', space=vmem, size = 0x8000, scoped, tag = 'input window, operand 1, single buffered']
    #allocation6 [shape = 's32[1]{0}', space=sflag, size = 0x4, scoped, tag = 'scoped memory for tpu_custom_call.1']
    #allocation7 [shape = 'u8[262144]{0}', space=vmem, size = 0x40000, scoped, tag = 'output window, operand 0']
    %8 = vsyncpa [#allocation3], 0
    %s9 = scalar_lea.sflag [#allocation3], 1
    %10 = vsyncpa %s9, 0
    %11 = vsyncpa [#allocation6], 0
    %12 = vsyncpa [#allocation4], 0
    %s13 = scalar_lea.sflag [#allocation4], 1
    %14 = vsyncpa %s13, 0
    loop: start=0, step=1, limit=4
    $region2: #{tpu_custom_call.1} parent=1 // loop_pre_header
      _
    $region3: #{tpu_custom_call.1} parent=1 // loop_header
      %s16 = sphi 0, %s20
      %p17 = scmp.ge.s32.totalorder %s16, 4
      %s26 = sphi 0, %s28
      %s29 = sphi 0, %s26
      %s30 = sphi 0, %s29
      %s46 = sphi 0, %s30
      %s50 = sphi 0, %s50
      %s52 = sphi 0, %s50
      %s53 = sphi 0, %s52
      %s67 = sphi 0, %s53
      %s71 = sphi 0, %s71
      %s73 = sphi 0, %s71
      %s74 = sphi 0, %s73
      %s88 = sphi 0, %s74
      %s94 = sphi 0, %s96
      %s97 = sphi 0, %s94
      %s98 = sphi 0, %s97
      %s114 = sphi 0, %s98
    $region4: #{tpu_custom_call.1} parent=1 // loop_header_branch
      %19 = sbr.rel (%p17) target = $region8
    $region5: #{tpu_custom_call.1} parent=1 // loop_body
      %s21 = ssub.s32 %s16, 1
      %s22 = ssub.s32 %s16, 2
      %s23 = sadd.s32 %s16, 1
      %s24 = ssub.s32 %s16, %s23
      %p25 = scmp.eq.s32.totalorder %s24, 0
      %s27 = sadd.s32 %s26, 1
      %s28 = scalar_select %p25, %s26, %s27
      %p31 = pneg %p25
      %p32 = scmp.eq.s32.totalorder %s16, 1
      %p33 = por %p31, %p32
      %p34 = scmp.ne.s32.totalorder %s26, %s29
      %p35 = scmp.eq.s32.totalorder %s16, 0
      %p36 = por %p34, %p35
      %p37 = scmp.ne.s32.totalorder %s26, %s29
      %p38 = scmp.eq.s32.totalorder %s21, 1
      %p39 = por %p37, %p38
      %p40 = scmp.ne.s32.totalorder %s29, %s30
      %p41 = scmp.eq.s32.totalorder %s21, 0
      %p42 = por %p40, %p41
      %p43 = scmp.ne.s32.totalorder %s29, %s30
      %p44 = scmp.eq.s32.totalorder %s22, 1
      %p45 = por %p43, %p44
      %p47 = scmp.ne.s32.totalorder %s30, %s46
      %p48 = scmp.eq.s32.totalorder %s22, 0
      %p49 = por %p47, %p48
      %s51 = sadd.s32 %s50, 1
      %p54 = scmp.eq.s32.totalorder %s16, 1
      %p55 = scmp.ne.s32.totalorder %s50, %s52
      %p56 = scmp.eq.s32.totalorder %s16, 0
      %p57 = por %p55, %p56
      %p58 = scmp.ne.s32.totalorder %s50, %s52
      %p59 = scmp.eq.s32.totalorder %s21, 1
      %p60 = por %p58, %p59
      %p61 = scmp.ne.s32.totalorder %s52, %s53
      %p62 = scmp.eq.s32.totalorder %s21, 0
      %p63 = por %p61, %p62
      %p64 = scmp.ne.s32.totalorder %s52, %s53
      %p65 = scmp.eq.s32.totalorder %s22, 1
      %p66 = por %p64, %p65
      %p68 = scmp.ne.s32.totalorder %s53, %s67
      %p69 = scmp.eq.s32.totalorder %s22, 0
      %p70 = por %p68, %p69
      %s72 = sadd.s32 %s71, 1
      %p75 = scmp.eq.s32.totalorder %s16, 1
      %p76 = scmp.ne.s32.totalorder %s71, %s73
      %p77 = scmp.eq.s32.totalorder %s16, 0
      %p78 = por %p76, %p77
      %p79 = scmp.ne.s32.totalorder %s71, %s73
      %p80 = scmp.eq.s32.totalorder %s21, 1
      %p81 = por %p79, %p80
      %p82 = scmp.ne.s32.totalorder %s73, %s74
      %p83 = scmp.eq.s32.totalorder %s21, 0
      %p84 = por %p82, %p83
      %p85 = scmp.ne.s32.totalorder %s73, %s74
      %p86 = scmp.eq.s32.totalorder %s22, 1
      %p87 = por %p85, %p86
      %p89 = scmp.ne.s32.totalorder %s74, %s88
      %p90 = scmp.eq.s32.totalorder %s22, 0
      %p91 = por %p89, %p90
      %s92 = ssub.s32 %s16, %s23
      %p93 = scmp.eq.s32.totalorder %s92, 0
      %s95 = sadd.s32 %s94, 1
      %s96 = scalar_select %p93, %s94, %s95
      %p99 = pneg %p93
      %p100 = scmp.eq.s32.totalorder %s16, 1
      %p101 = por %p99, %p100
      %p102 = scmp.ne.s32.totalorder %s94, %s97
      %p103 = scmp.eq.s32.totalorder %s16, 0
      %p104 = por %p102, %p103
      %p105 = scmp.ne.s32.totalorder %s94, %s97
      %p106 = scmp.eq.s32.totalorder %s21, 1
      %p107 = por %p105, %p106
      %p108 = scmp.ne.s32.totalorder %s97, %s98
      %p109 = scmp.eq.s32.totalorder %s21, 0
      %p110 = por %p108, %p109
      %p111 = scmp.ne.s32.totalorder %s97, %s98
      %p112 = scmp.eq.s32.totalorder %s22, 1
      %p113 = por %p111, %p112
      %p115 = scmp.ne.s32.totalorder %s98, %s114
      %p116 = scmp.eq.s32.totalorder %s22, 0
      %p117 = por %p115, %p116
      %p118 = scmp.le.s32.totalorder 1, %s16
      %p119 = scmp.lt.s32.totalorder %s16, 3
      %p120 = pnand %p118, %p119
      %p121 = pneg %p120
      // Predicated region
      $region9: #{tpu_custom_call.1} parent=5 // pred_check
        _
      $region10: #{tpu_custom_call.1} parent=5 // pred_check_branch
        %123 = sbr.rel (%p120) target = $region12
      $region11: #{tpu_custom_call.1} parent=5 // pred_region
        %s124 = ssub.s32 %s16, 1
        // Predicated region
        $region13: #{tpu_custom_call.1} parent=11 // pred_check
          %p125 = pneg %p63
        $region14: #{tpu_custom_call.1} parent=11 // pred_check_branch
          %127 = sbr.rel (%p125) target = $region16
        $region15: #{tpu_custom_call.1} parent=11 // pred_region
          %s129 = ssub.s32 1024, 1024
          %130 = vsyncadd [#allocation6], %s129
          %s131 = sshll.u32 [#allocation5], 4
          %s132 = int_to_ptr.vmem [resolvable:$true] %s131
          %137 = dma.hbm_to_vmem [thread:$0]  %s1, 1024, %s132, [#allocation6], 64, 64, 4
        $region16: #{tpu_custom_call.1} parent=11 // pred_fallthru
          _
        // Predicated region
        $region17: #{tpu_custom_call.1} parent=11 // pred_check
          %p138 = pneg %p84
        $region18: #{tpu_custom_call.1} parent=11 // pred_check_branch
          %140 = sbr.rel (%p138) target = $region20
        $region19: #{tpu_custom_call.1} parent=11 // pred_region
          _
        $region20: #{tpu_custom_call.1} parent=11 // pred_fallthru
          _
      $region12: #{tpu_custom_call.1} parent=5 // pred_fallthru
        _
      %p141 = scmp.lt.s32.totalorder %s16, 2
      // Predicated region
      $region21: #{tpu_custom_call.1} parent=5 // pred_check
        %p142 = pneg %p141
      $region22: #{tpu_custom_call.1} parent=5 // pred_check_branch
        %144 = sbr.rel (%p142) target = $region24
      $region23: #{tpu_custom_call.1} parent=5 // pred_region
        // Predicated region
        $region25: #{tpu_custom_call.1} parent=23 // pred_check
          %p145 = pneg %p36
        $region26: #{tpu_custom_call.1} parent=23 // pred_check_branch
          %147 = sbr.rel (%p145) target = $region28
        $region27: #{tpu_custom_call.1} parent=23 // pred_region
          %s148 = sand.u32 %s26, 1
          %s149 = scalar_lea.sflag [#allocation3], %s148
          %s150 = sand.u32 %s26, 1
          %s151 = smul.addr %s150, 256
          %s152 = scalar_lea.vmem [#allocation2], %s151
          %s153 = smul.u32 64, %s16
          %s155 = ssub.s32 4096, 4096
          %156 = vsyncadd %s149, %s155
          %s157 = smul.addr %s153, 64
          %s158 = scalar_lea.hbm %s0, %s157
          %s159 = sshll.u32 %s152, 4
          %s160 = int_to_ptr.vmem [resolvable:$true] %s159
          %165 = dma.hbm_to_vmem [thread:$0]  %s158, 4096, %s160, %s149, 64, 64, 4
        $region28: #{tpu_custom_call.1} parent=23 // pred_fallthru
          _
      $region24: #{tpu_custom_call.1} parent=5 // pred_fallthru
        _
      %p166 = scmp.le.s32.totalorder 1, %s16
      %p167 = scmp.lt.s32.totalorder %s16, 3
      %p168 = pnand %p166, %p167
      %p169 = pneg %p168
      // Predicated region
      $region29: #{tpu_custom_call.1} parent=5 // pred_check
        _
      $region30: #{tpu_custom_call.1} parent=5 // pred_check_branch
        %171 = sbr.rel (%p168) target = $region32
      $region31: #{tpu_custom_call.1} parent=5 // pred_region
        %s172 = ssub.s32 %s16, 1
        %s173 = sand.u32 %s29, 1
        %s174 = scalar_lea.sflag [#allocation3], %s173
        %s175 = sand.u32 %s29, 1
        %s176 = smul.addr %s175, 256
        %s177 = scalar_lea.vmem [#allocation2], %s176
        // Predicated region
        $region33: #{tpu_custom_call.1} parent=31 // pred_check
          %p178 = pneg %p42
        $region34: #{tpu_custom_call.1} parent=31 // pred_check_branch
          %180 = sbr.rel (%p178) target = $region36
        $region35: #{tpu_custom_call.1} parent=31 // pred_region
          %181 = dma.done %s174, 4096
        $region36: #{tpu_custom_call.1} parent=31 // pred_fallthru
          _
        // Predicated region
        $region37: #{tpu_custom_call.1} parent=31 // pred_check
          %p182 = pneg %p63
        $region38: #{tpu_custom_call.1} parent=31 // pred_check_branch
          %184 = sbr.rel (%p182) target = $region40
        $region39: #{tpu_custom_call.1} parent=31 // pred_region
          %185 = dma.done [#allocation6], 1024
        $region40: #{tpu_custom_call.1} parent=31 // pred_fallthru
          _
        %s186 = sand.u32 %s29, 1
        %s187 = scalar_lea.sflag [#allocation3], %s186
        %s188 = sand.u32 %s29, 1
        %s189 = smul.addr %s188, 256
        %s190 = scalar_lea.vmem [#allocation2], %s189
        %p191 = pneg %p42
        %p192 = pneg %p39
        %p193 = pneg %p63
        %p194 = pneg %p60
        %p195 = pneg %p84
        %p196 = pneg %p81
        %p197 = pneg %p110
        %p198 = pneg %p107
        %s199 = sand.u32 %s97, 1
        %s200 = scalar_lea.sflag [#allocation4], %s199
        %s201 = sand.u32 %s97, 1
        %s202 = smul.addr %s201, 256
        %s203 = scalar_lea.vmem [#allocation7], %s202
        %s204 = smul.u32 64, %s21
        %s205 = smul.u32 64, %s21
        %v207 = vld [vmem:[%s177] sm:$0xf]
        %v208 = vld [vmem:[%s177 + $0x4] sm:$0xf]
        %v209 = vld [vmem:[%s177 + $0x8] sm:$0xf]
        %v210 = vld [vmem:[%s177 + $0xc] sm:$0xf]
        %v211 = vld [vmem:[%s177 + $0x10] sm:$0xf]
        %v212 = vld [vmem:[%s177 + $0x14] sm:$0xf]
        %v213 = vld [vmem:[%s177 + $0x18] sm:$0xf]
        %v214 = vld [vmem:[%s177 + $0x1c] sm:$0xf]
        %v215 = vld [vmem:[%s177 + $0x20] sm:$0xf]
        %v216 = vld [vmem:[%s177 + $0x24] sm:$0xf]
        %v217 = vld [vmem:[%s177 + $0x28] sm:$0xf]
        %v218 = vld [vmem:[%s177 + $0x2c] sm:$0xf]
        %v219 = vld [vmem:[%s177 + $0x30] sm:$0xf]
        %v220 = vld [vmem:[%s177 + $0x34] sm:$0xf]
        %v221 = vld [vmem:[%s177 + $0x38] sm:$0xf]
        %v222 = vld [vmem:[%s177 + $0x3c] sm:$0xf]
        %v223 = vld [vmem:[%s177 + $0x40] sm:$0xf]
        %v224 = vld [vmem:[%s177 + $0x44] sm:$0xf]
        %v225 = vld [vmem:[%s177 + $0x48] sm:$0xf]
        %v226 = vld [vmem:[%s177 + $0x4c] sm:$0xf]
        %v227 = vld [vmem:[%s177 + $0x50] sm:$0xf]
        %v228 = vld [vmem:[%s177 + $0x54] sm:$0xf]
        %v229 = vld [vmem:[%s177 + $0x58] sm:$0xf]
        %v230 = vld [vmem:[%s177 + $0x5c] sm:$0xf]
        %v231 = vld [vmem:[%s177 + $0x60] sm:$0xf]
        %v232 = vld [vmem:[%s177 + $0x64] sm:$0xf]
        %v233 = vld [vmem:[%s177 + $0x68] sm:$0xf]
        %v234 = vld [vmem:[%s177 + $0x6c] sm:$0xf]
        %v235 = vld [vmem:[%s177 + $0x70] sm:$0xf]
        %v236 = vld [vmem:[%s177 + $0x74] sm:$0xf]
        %v237 = vld [vmem:[%s177 + $0x78] sm:$0xf]
        %v238 = vld [vmem:[%s177 + $0x7c] sm:$0xf]
        %v239 = vld [vmem:[%s177 + $0x80] sm:$0xf]
        %v240 = vld [vmem:[%s177 + $0x84] sm:$0xf]
        %v241 = vld [vmem:[%s177 + $0x88] sm:$0xf]
        %v242 = vld [vmem:[%s177 + $0x8c] sm:$0xf]
        %v243 = vld [vmem:[%s177 + $0x90] sm:$0xf]
        %v244 = vld [vmem:[%s177 + $0x94] sm:$0xf]
        %v245 = vld [vmem:[%s177 + $0x98] sm:$0xf]
        %v246 = vld [vmem:[%s177 + $0x9c] sm:$0xf]
        %v247 = vld [vmem:[%s177 + $0xa0] sm:$0xf]
        %v248 = vld [vmem:[%s177 + $0xa4] sm:$0xf]
        %v249 = vld [vmem:[%s177 + $0xa8] sm:$0xf]
        %v250 = vld [vmem:[%s177 + $0xac] sm:$0xf]
        %v251 = vld [vmem:[%s177 + $0xb0] sm:$0xf]
        %v252 = vld [vmem:[%s177 + $0xb4] sm:$0xf]
        %v253 = vld [vmem:[%s177 + $0xb8] sm:$0xf]
        %v254 = vld [vmem:[%s177 + $0xbc] sm:$0xf]
        %v255 = vld [vmem:[%s177 + $0xc0] sm:$0xf]
        %v256 = vld [vmem:[%s177 + $0xc4] sm:$0xf]
        %v257 = vld [vmem:[%s177 + $0xc8] sm:$0xf]
        %v258 = vld [vmem:[%s177 + $0xcc] sm:$0xf]
        %v259 = vld [vmem:[%s177 + $0xd0] sm:$0xf]
        %v260 = vld [vmem:[%s177 + $0xd4] sm:$0xf]
        %v261 = vld [vmem:[%s177 + $0xd8] sm:$0xf]
        %v262 = vld [vmem:[%s177 + $0xdc] sm:$0xf]
        %v263 = vld [vmem:[%s177 + $0xe0] sm:$0xf]
        %v264 = vld [vmem:[%s177 + $0xe4] sm:$0xf]
        %v265 = vld [vmem:[%s177 + $0xe8] sm:$0xf]
        %v266 = vld [vmem:[%s177 + $0xec] sm:$0xf]
        %v267 = vld [vmem:[%s177 + $0xf0] sm:$0xf]
        %v268 = vld [vmem:[%s177 + $0xf4] sm:$0xf]
        %v269 = vld [vmem:[%s177 + $0xf8] sm:$0xf]
        %v270 = vld [vmem:[%s177 + $0xfc] sm:$0xf]
        %v271 = vld [vmem:[#allocation5] sm:$0xf]
        %v272 = vld [vmem:[#allocation5 + $0x4] sm:$0xf]
        %v273 = vld [vmem:[#allocation5 + $0x8] sm:$0xf]
        %v274 = vld [vmem:[#allocation5 + $0xc] sm:$0xf]
        %v275 = vld [vmem:[#allocation5 + $0x10] sm:$0xf]
        %v276 = vld [vmem:[#allocation5 + $0x14] sm:$0xf]
        %v277 = vld [vmem:[#allocation5 + $0x18] sm:$0xf]
        %v278 = vld [vmem:[#allocation5 + $0x1c] sm:$0xf]
        %v279 = vld [vmem:[#allocation5 + $0x20] sm:$0xf]
        %v280 = vld [vmem:[#allocation5 + $0x24] sm:$0xf]
        %v281 = vld [vmem:[#allocation5 + $0x28] sm:$0xf]
        %v282 = vld [vmem:[#allocation5 + $0x2c] sm:$0xf]
        %v283 = vld [vmem:[#allocation5 + $0x30] sm:$0xf]
        %v284 = vld [vmem:[#allocation5 + $0x34] sm:$0xf]
        %v285 = vld [vmem:[#allocation5 + $0x38] sm:$0xf]
        %v286 = vld [vmem:[#allocation5 + $0x3c] sm:$0xf]
        %v287 = vld [vmem:[%s2] sm:$0x1]
        %v289 = vlaneseq
        %v290 = vshrl.u32 %v289, 7
        %v291 = vsub.s32 0, %v290
        %v292 = vrot.slane %v287, %v291
        %v358 = vunpack.c.l.b16 %v207
        %v359 = vunpack.c.l.b16 %v208
        %v360 = vunpack.c.l.b16 %v209
        %v361 = vunpack.c.l.b16 %v210
        %v362 = vunpack.c.l.b16 %v211
        %v363 = vunpack.c.l.b16 %v212
        %v364 = vunpack.c.l.b16 %v213
        %v365 = vunpack.c.l.b16 %v214
        %v366 = vunpack.c.l.b16 %v215
        %v367 = vunpack.c.l.b16 %v216
        %v368 = vunpack.c.l.b16 %v217
        %v369 = vunpack.c.l.b16 %v218
        %v370 = vunpack.c.l.b16 %v219
        %v371 = vunpack.c.l.b16 %v220
        %v372 = vunpack.c.l.b16 %v221
        %v373 = vunpack.c.l.b16 %v222
        %v374 = vunpack.c.l.b16 %v223
        %v375 = vunpack.c.l.b16 %v224
        %v376 = vunpack.c.l.b16 %v225
        %v377 = vunpack.c.l.b16 %v226
        %v378 = vunpack.c.l.b16 %v227
        %v379 = vunpack.c.l.b16 %v228
        %v380 = vunpack.c.l.b16 %v229
        %v381 = vunpack.c.l.b16 %v230
        %v382 = vunpack.c.l.b16 %v231
        %v383 = vunpack.c.l.b16 %v232
        %v384 = vunpack.c.l.b16 %v233
        %v385 = vunpack.c.l.b16 %v234
        %v386 = vunpack.c.l.b16 %v235
        %v387 = vunpack.c.l.b16 %v236
        %v388 = vunpack.c.l.b16 %v237
        %v389 = vunpack.c.l.b16 %v238
        %v390 = vunpack.c.l.b16 %v239
        %v391 = vunpack.c.l.b16 %v240
        %v392 = vunpack.c.l.b16 %v241
        %v393 = vunpack.c.l.b16 %v242
        %v394 = vunpack.c.l.b16 %v243
        %v395 = vunpack.c.l.b16 %v244
        %v396 = vunpack.c.l.b16 %v245
        %v397 = vunpack.c.l.b16 %v246
        %v398 = vunpack.c.l.b16 %v247
        %v399 = vunpack.c.l.b16 %v248
        %v400 = vunpack.c.l.b16 %v249
        %v401 = vunpack.c.l.b16 %v250
        %v402 = vunpack.c.l.b16 %v251
        %v403 = vunpack.c.l.b16 %v252
        %v404 = vunpack.c.l.b16 %v253
        %v405 = vunpack.c.l.b16 %v254
        %v406 = vunpack.c.l.b16 %v255
        %v407 = vunpack.c.l.b16 %v256
        %v408 = vunpack.c.l.b16 %v257
        %v409 = vunpack.c.l.b16 %v258
        %v410 = vunpack.c.l.b16 %v259
        %v411 = vunpack.c.l.b16 %v260
        %v412 = vunpack.c.l.b16 %v261
        %v413 = vunpack.c.l.b16 %v262
        %v414 = vunpack.c.l.b16 %v263
        %v415 = vunpack.c.l.b16 %v264
        %v416 = vunpack.c.l.b16 %v265
        %v417 = vunpack.c.l.b16 %v266
        %v418 = vunpack.c.l.b16 %v267
        %v419 = vunpack.c.l.b16 %v268
        %v420 = vunpack.c.l.b16 %v269
        %v421 = vunpack.c.l.b16 %v270
        %v422 = vpack.c.b16 %v359, %v358
        %v423 = vpack.c.b16 %v361, %v360
        %v424 = vpack.c.b16 %v363, %v362
        %v425 = vpack.c.b16 %v365, %v364
        %v426 = vpack.c.b16 %v367, %v366
        %v427 = vpack.c.b16 %v369, %v368
        %v428 = vpack.c.b16 %v371, %v370
        %v429 = vpack.c.b16 %v373, %v372
        %v430 = vpack.c.b16 %v375, %v374
        %v431 = vpack.c.b16 %v377, %v376
        %v432 = vpack.c.b16 %v379, %v378
        %v433 = vpack.c.b16 %v381, %v380
        %v434 = vpack.c.b16 %v383, %v382
        %v435 = vpack.c.b16 %v385, %v384
        %v436 = vpack.c.b16 %v387, %v386
        %v437 = vpack.c.b16 %v389, %v388
        %v438 = vpack.c.b16 %v391, %v390
        %v439 = vpack.c.b16 %v393, %v392
        %v440 = vpack.c.b16 %v395, %v394
        %v441 = vpack.c.b16 %v397, %v396
        %v442 = vpack.c.b16 %v399, %v398
        %v443 = vpack.c.b16 %v401, %v400
        %v444 = vpack.c.b16 %v403, %v402
        %v445 = vpack.c.b16 %v405, %v404
        %v446 = vpack.c.b16 %v407, %v406
        %v447 = vpack.c.b16 %v409, %v408
        %v448 = vpack.c.b16 %v411, %v410
        %v449 = vpack.c.b16 %v413, %v412
        %v450 = vpack.c.b16 %v415, %v414
        %v451 = vpack.c.b16 %v417, %v416
        %v452 = vpack.c.b16 %v419, %v418
        %v453 = vpack.c.b16 %v421, %v420
        %v502 = vunpack.c.l.b16 %v271
        %v503 = vunpack.c.l.b16 %v272
        %v504 = vunpack.c.l.b16 %v273
        %v505 = vunpack.c.l.b16 %v274
        %v506 = vunpack.c.l.b16 %v275
        %v507 = vunpack.c.l.b16 %v276
        %v508 = vunpack.c.l.b16 %v277
        %v509 = vunpack.c.l.b16 %v278
        %v510 = vunpack.c.l.b16 %v279
        %v511 = vunpack.c.l.b16 %v280
        %v512 = vunpack.c.l.b16 %v281
        %v513 = vunpack.c.l.b16 %v282
        %v514 = vunpack.c.l.b16 %v283
        %v515 = vunpack.c.l.b16 %v284
        %v516 = vunpack.c.l.b16 %v285
        %v517 = vunpack.c.l.b16 %v286
        %v518 = vpack.c.b16 %v503, %v502
        %v519 = vpack.c.b16 %v505, %v504
        %v520 = vpack.c.b16 %v507, %v506
        %v521 = vpack.c.b16 %v509, %v508
        %v522 = vpack.c.b16 %v511, %v510
        %v523 = vpack.c.b16 %v513, %v512
        %v524 = vpack.c.b16 %v515, %v514
        %v525 = vpack.c.b16 %v517, %v516
        %534 = vmatprep.subr.bf16.mxu0 0
        %535 = vmatpush1.bf16.msra.mxu0 %v525
        %536 = vmatprep.subr.bf16.mxu0 0
        %537 = vmatpush1.bf16.msra.mxu0 %v524
        %538 = vmatprep.subr.bf16.mxu0 0
        %539 = vmatpush1.bf16.msra.mxu0 %v523
        %540 = vmatprep.subr.bf16.mxu0 0
        %541 = vmatpush1.bf16.msra.mxu0 %v522
        %542 = vmatprep.subr.bf16.mxu0 0
        %543 = vmatpush1.bf16.msra.mxu0 %v521
        %544 = vmatprep.subr.bf16.mxu0 0
        %545 = vmatpush1.bf16.msra.mxu0 %v520
        %546 = vmatprep.subr.bf16.mxu0 0
        %547 = vmatpush1.bf16.msra.mxu0 %v519
        %548 = vmatprep.subr.bf16.mxu0 0
        %549 = vmatpush1.bf16.msra.mxu0 %v518
        %550 = vmatprep.subr.bf16.mxu0 0
        %551 = vmatpush2.bf16.msra.mxu0 0
        %552 = vmatprep.subr.bf16.mxu0 0
        %553 = vmatpush2.bf16.msra.mxu0 0
        %554 = vmatprep.subr.bf16.mxu0 0
        %555 = vmatpush2.bf16.msra.mxu0 0
        %556 = vmatprep.subr.bf16.mxu0 0
        %557 = vmatpush2.bf16.msra.mxu0 0
        %558 = vmatprep.subr.bf16.mxu0 0
        %559 = vmatpush2.bf16.msra.mxu0 0
        %560 = vmatprep.subr.bf16.mxu0 0
        %561 = vmatpush2.bf16.msra.mxu0 0
        %562 = vmatprep.subr.bf16.mxu0 0
        %563 = vmatpush2.bf16.msra.mxu0 0
        %564 = vmatprep.subr.bf16.mxu0 0
        %565 = vmatpush2.bf16.msra.mxu0 0
        %566 = vmatprep.mubr.bf16.mxu0 0
        %567 = vmatmul.mubr.bf16.gmra.mxu0 %v422
        %v568 = vpop.f32.mrf.mxu0
        %v569 = vadd.f32 %v292, %v568
        %v570 = vpop.f32.mrf.mxu0
        %v571 = vpop.f32.mrf.mxu0
        %v572 = vadd.f32 %v292, %v571
        %v573 = vpop.f32.mrf.mxu0
        %574 = vmatprep.mubr.bf16.mxu0 0
        %575 = vmatmul.mubr.bf16.gmra.mxu0 %v423
        %v576 = vpop.f32.mrf.mxu0
        %v577 = vadd.f32 %v292, %v576
        %v578 = vpop.f32.mrf.mxu0
        %v579 = vpop.f32.mrf.mxu0
        %v580 = vadd.f32 %v292, %v579
        %v581 = vpop.f32.mrf.mxu0
        %582 = vmatprep.mubr.bf16.mxu0 0
        %583 = vmatmul.mubr.bf16.gmra.mxu0 %v424
        %v584 = vpop.f32.mrf.mxu0
        %v585 = vadd.f32 %v292, %v584
        %v586 = vpop.f32.mrf.mxu0
        %v587 = vpop.f32.mrf.mxu0
        %v588 = vadd.f32 %v292, %v587
        %v589 = vpop.f32.mrf.mxu0
        %590 = vmatprep.mubr.bf16.mxu0 0
        %591 = vmatmul.mubr.bf16.gmra.mxu0 %v425
        %v592 = vpop.f32.mrf.mxu0
        %v593 = vadd.f32 %v292, %v592
        %v594 = vpop.f32.mrf.mxu0
        %v595 = vpop.f32.mrf.mxu0
        %v596 = vadd.f32 %v292, %v595
        %v597 = vpop.f32.mrf.mxu0
        %598 = vmatprep.mubr.bf16.mxu0 0
        %599 = vmatmul.mubr.bf16.gmra.mxu0 %v426
        %v600 = vpop.f32.mrf.mxu0
        %v601 = vadd.f32 %v292, %v600
        %v602 = vpop.f32.mrf.mxu0
        %v603 = vpop.f32.mrf.mxu0
        %v604 = vadd.f32 %v292, %v603
        %v605 = vpop.f32.mrf.mxu0
        %606 = vmatprep.mubr.bf16.mxu0 0
        %607 = vmatmul.mubr.bf16.gmra.mxu0 %v427
        %v608 = vpop.f32.mrf.mxu0
        %v609 = vadd.f32 %v292, %v608
        %v610 = vpop.f32.mrf.mxu0
        %v611 = vpop.f32.mrf.mxu0
        %v612 = vadd.f32 %v292, %v611
        %v613 = vpop.f32.mrf.mxu0
        %614 = vmatprep.mubr.bf16.mxu0 0
        %615 = vmatmul.mubr.bf16.gmra.mxu0 %v428
        %v616 = vpop.f32.mrf.mxu0
        %v617 = vadd.f32 %v292, %v616
        %v618 = vpop.f32.mrf.mxu0
        %v619 = vpop.f32.mrf.mxu0
        %v620 = vadd.f32 %v292, %v619
        %v621 = vpop.f32.mrf.mxu0
        %622 = vmatprep.mubr.bf16.mxu0 0
        %623 = vmatmul.mubr.bf16.gmra.mxu0 %v429
        %v624 = vpop.f32.mrf.mxu0
        %v625 = vadd.f32 %v292, %v624
        %v626 = vpop.f32.mrf.mxu0
        %v627 = vpop.f32.mrf.mxu0
        %v628 = vadd.f32 %v292, %v627
        %v629 = vpop.f32.mrf.mxu0
        %630 = vmatprep.mubr.bf16.mxu0 0
        %631 = vmatmul.mubr.bf16.gmra.mxu0 %v430
        %v632 = vpop.f32.mrf.mxu0
        %v633 = vadd.f32 %v292, %v632
        %v634 = vpop.f32.mrf.mxu0
        %v635 = vpop.f32.mrf.mxu0
        %v636 = vadd.f32 %v292, %v635
        %v637 = vpop.f32.mrf.mxu0
        %638 = vmatprep.mubr.bf16.mxu0 0
        %639 = vmatmul.mubr.bf16.gmra.mxu0 %v431
        %v640 = vpop.f32.mrf.mxu0
        %v641 = vadd.f32 %v292, %v640
        %v642 = vpop.f32.mrf.mxu0
        %v643 = vpop.f32.mrf.mxu0
        %v644 = vadd.f32 %v292, %v643
        %v645 = vpop.f32.mrf.mxu0
        %646 = vmatprep.mubr.bf16.mxu0 0
        %647 = vmatmul.mubr.bf16.gmra.mxu0 %v432
        %v648 = vpop.f32.mrf.mxu0
        %v649 = vadd.f32 %v292, %v648
        %v650 = vpop.f32.mrf.mxu0
        %v651 = vpop.f32.mrf.mxu0
        %v652 = vadd.f32 %v292, %v651
        %v653 = vpop.f32.mrf.mxu0
        %654 = vmatprep.mubr.bf16.mxu0 0
        %655 = vmatmul.mubr.bf16.gmra.mxu0 %v433
        %v656 = vpop.f32.mrf.mxu0
        %v657 = vadd.f32 %v292, %v656
        %v658 = vpop.f32.mrf.mxu0
        %v659 = vpop.f32.mrf.mxu0
        %v660 = vadd.f32 %v292, %v659
        %v661 = vpop.f32.mrf.mxu0
        %662 = vmatprep.mubr.bf16.mxu0 0
        %663 = vmatmul.mubr.bf16.gmra.mxu0 %v434
        %v664 = vpop.f32.mrf.mxu0
        %v665 = vadd.f32 %v292, %v664
        %v666 = vpop.f32.mrf.mxu0
        %v667 = vpop.f32.mrf.mxu0
        %v668 = vadd.f32 %v292, %v667
        %v669 = vpop.f32.mrf.mxu0
        %670 = vmatprep.mubr.bf16.mxu0 0
        %671 = vmatmul.mubr.bf16.gmra.mxu0 %v435
        %v672 = vpop.f32.mrf.mxu0
        %v673 = vadd.f32 %v292, %v672
        %v674 = vpop.f32.mrf.mxu0
        %v675 = vpop.f32.mrf.mxu0
        %v676 = vadd.f32 %v292, %v675
        %v677 = vpop.f32.mrf.mxu0
        %678 = vmatprep.mubr.bf16.mxu0 0
        %679 = vmatmul.mubr.bf16.gmra.mxu0 %v436
        %v680 = vpop.f32.mrf.mxu0
        %v681 = vadd.f32 %v292, %v680
        %v682 = vpop.f32.mrf.mxu0
        %v683 = vpop.f32.mrf.mxu0
        %v684 = vadd.f32 %v292, %v683
        %v685 = vpop.f32.mrf.mxu0
        %686 = vmatprep.mubr.bf16.mxu0 0
        %687 = vmatmul.mubr.bf16.gmra.mxu0 %v437
        %v688 = vpop.f32.mrf.mxu0
        %v689 = vadd.f32 %v292, %v688
        %v690 = vpop.f32.mrf.mxu0
        %v691 = vpop.f32.mrf.mxu0
        %v692 = vadd.f32 %v292, %v691
        %v693 = vpop.f32.mrf.mxu0
        %694 = vmatprep.mubr.bf16.mxu0 0
        %695 = vmatmul.mubr.bf16.gmra.mxu0 %v438
        %v696 = vpop.f32.mrf.mxu0
        %v697 = vadd.f32 %v292, %v696
        %v698 = vpop.f32.mrf.mxu0
        %v699 = vpop.f32.mrf.mxu0
        %v700 = vadd.f32 %v292, %v699
        %v701 = vpop.f32.mrf.mxu0
        %702 = vmatprep.mubr.bf16.mxu0 0
        %703 = vmatmul.mubr.bf16.gmra.mxu0 %v439
        %v704 = vpop.f32.mrf.mxu0
        %v705 = vadd.f32 %v292, %v704
        %v706 = vpop.f32.mrf.mxu0
        %v707 = vpop.f32.mrf.mxu0
        %v708 = vadd.f32 %v292, %v707
        %v709 = vpop.f32.mrf.mxu0
        %710 = vmatprep.mubr.bf16.mxu0 0
        %711 = vmatmul.mubr.bf16.gmra.mxu0 %v440
        %v712 = vpop.f32.mrf.mxu0
        %v713 = vadd.f32 %v292, %v712
        %v714 = vpop.f32.mrf.mxu0
        %v715 = vpop.f32.mrf.mxu0
        %v716 = vadd.f32 %v292, %v715
        %v717 = vpop.f32.mrf.mxu0
        %718 = vmatprep.mubr.bf16.mxu0 0
        %719 = vmatmul.mubr.bf16.gmra.mxu0 %v441
        %v720 = vpop.f32.mrf.mxu0
        %v721 = vadd.f32 %v292, %v720
        %v722 = vpop.f32.mrf.mxu0
        %v723 = vpop.f32.mrf.mxu0
        %v724 = vadd.f32 %v292, %v723
        %v725 = vpop.f32.mrf.mxu0
        %726 = vmatprep.mubr.bf16.mxu0 0
        %727 = vmatmul.mubr.bf16.gmra.mxu0 %v442
        %v728 = vpop.f32.mrf.mxu0
        %v729 = vadd.f32 %v292, %v728
        %v730 = vpop.f32.mrf.mxu0
        %v731 = vpop.f32.mrf.mxu0
        %v732 = vadd.f32 %v292, %v731
        %v733 = vpop.f32.mrf.mxu0
        %734 = vmatprep.mubr.bf16.mxu0 0
        %735 = vmatmul.mubr.bf16.gmra.mxu0 %v443
        %v736 = vpop.f32.mrf.mxu0
        %v737 = vadd.f32 %v292, %v736
        %v738 = vpop.f32.mrf.mxu0
        %v739 = vpop.f32.mrf.mxu0
        %v740 = vadd.f32 %v292, %v739
        %v741 = vpop.f32.mrf.mxu0
        %742 = vmatprep.mubr.bf16.mxu0 0
        %743 = vmatmul.mubr.bf16.gmra.mxu0 %v444
        %v744 = vpop.f32.mrf.mxu0
        %v745 = vadd.f32 %v292, %v744
        %v746 = vpop.f32.mrf.mxu0
        %v747 = vpop.f32.mrf.mxu0
        %v748 = vadd.f32 %v292, %v747
        %v749 = vpop.f32.mrf.mxu0
        %750 = vmatprep.mubr.bf16.mxu0 0
        %751 = vmatmul.mubr.bf16.gmra.mxu0 %v445
        %v752 = vpop.f32.mrf.mxu0
        %v753 = vadd.f32 %v292, %v752
        %v754 = vpop.f32.mrf.mxu0
        %v755 = vpop.f32.mrf.mxu0
        %v756 = vadd.f32 %v292, %v755
        %v757 = vpop.f32.mrf.mxu0
        %758 = vmatprep.mubr.bf16.mxu0 0
        %759 = vmatmul.mubr.bf16.gmra.mxu0 %v446
        %v760 = vpop.f32.mrf.mxu0
        %v761 = vadd.f32 %v292, %v760
        %v762 = vpop.f32.mrf.mxu0
        %v763 = vpop.f32.mrf.mxu0
        %v764 = vadd.f32 %v292, %v763
        %v765 = vpop.f32.mrf.mxu0
        %766 = vmatprep.mubr.bf16.mxu0 0
        %767 = vmatmul.mubr.bf16.gmra.mxu0 %v447
        %v768 = vpop.f32.mrf.mxu0
        %v769 = vadd.f32 %v292, %v768
        %v770 = vpop.f32.mrf.mxu0
        %v771 = vpop.f32.mrf.mxu0
        %v772 = vadd.f32 %v292, %v771
        %v773 = vpop.f32.mrf.mxu0
        %774 = vmatprep.mubr.bf16.mxu0 0
        %775 = vmatmul.mubr.bf16.gmra.mxu0 %v448
        %v776 = vpop.f32.mrf.mxu0
        %v777 = vadd.f32 %v292, %v776
        %v778 = vpop.f32.mrf.mxu0
        %v779 = vpop.f32.mrf.mxu0
        %v780 = vadd.f32 %v292, %v779
        %v781 = vpop.f32.mrf.mxu0
        %782 = vmatprep.mubr.bf16.mxu0 0
        %783 = vmatmul.mubr.bf16.gmra.mxu0 %v449
        %v784 = vpop.f32.mrf.mxu0
        %v785 = vadd.f32 %v292, %v784
        %v786 = vpop.f32.mrf.mxu0
        %v787 = vpop.f32.mrf.mxu0
        %v788 = vadd.f32 %v292, %v787
        %v789 = vpop.f32.mrf.mxu0
        %790 = vmatprep.mubr.bf16.mxu0 0
        %791 = vmatmul.mubr.bf16.gmra.mxu0 %v450
        %v792 = vpop.f32.mrf.mxu0
        %v793 = vadd.f32 %v292, %v792
        %v794 = vpop.f32.mrf.mxu0
        %v795 = vpop.f32.mrf.mxu0
        %v796 = vadd.f32 %v292, %v795
        %v797 = vpop.f32.mrf.mxu0
        %798 = vmatprep.mubr.bf16.mxu0 0
        %799 = vmatmul.mubr.bf16.gmra.mxu0 %v451
        %v800 = vpop.f32.mrf.mxu0
        %v801 = vadd.f32 %v292, %v800
        %v802 = vpop.f32.mrf.mxu0
        %v803 = vpop.f32.mrf.mxu0
        %v804 = vadd.f32 %v292, %v803
        %v805 = vpop.f32.mrf.mxu0
        %806 = vmatprep.mubr.bf16.mxu0 0
        %807 = vmatmul.mubr.bf16.gmra.mxu0 %v452
        %v808 = vpop.f32.mrf.mxu0
        %v809 = vadd.f32 %v292, %v808
        %v810 = vpop.f32.mrf.mxu0
        %v811 = vpop.f32.mrf.mxu0
        %v812 = vadd.f32 %v292, %v811
        %v813 = vpop.f32.mrf.mxu0
        %814 = vmatprep.mubr.bf16.mxu0 0
        %815 = vmatmul.mubr.bf16.gmra.mxu0 %v453
        %v816 = vpop.f32.mrf.mxu0
        %v817 = vadd.f32 %v292, %v816
        %v818 = vpop.f32.mrf.mxu0
        %v819 = vpop.f32.mrf.mxu0
        %v820 = vadd.f32 %v292, %v819
        %v821 = vpop.f32.mrf.mxu0
        %822 = vdwg.mxu0
        %v823 = vpack.c.bf16 %v572, %v569
        %v824 = vpack.c.bf16 %v580, %v577
        %v825 = vpack.c.bf16 %v588, %v585
        %v826 = vpack.c.bf16 %v596, %v593
        %v827 = vpack.c.bf16 %v604, %v601
        %v828 = vpack.c.bf16 %v612, %v609
        %v829 = vpack.c.bf16 %v620, %v617
        %v830 = vpack.c.bf16 %v628, %v625
        %v831 = vpack.c.bf16 %v636, %v633
        %v832 = vpack.c.bf16 %v644, %v641
        %v833 = vpack.c.bf16 %v652, %v649
        %v834 = vpack.c.bf16 %v660, %v657
        %v835 = vpack.c.bf16 %v668, %v665
        %v836 = vpack.c.bf16 %v676, %v673
        %v837 = vpack.c.bf16 %v684, %v681
        %v838 = vpack.c.bf16 %v692, %v689
        %v839 = vpack.c.bf16 %v700, %v697
        %v840 = vpack.c.bf16 %v708, %v705
        %v841 = vpack.c.bf16 %v716, %v713
        %v842 = vpack.c.bf16 %v724, %v721
        %v843 = vpack.c.bf16 %v732, %v729
        %v844 = vpack.c.bf16 %v740, %v737
        %v845 = vpack.c.bf16 %v748, %v745
        %v846 = vpack.c.bf16 %v756, %v753
        %v847 = vpack.c.bf16 %v764, %v761
        %v848 = vpack.c.bf16 %v772, %v769
        %v849 = vpack.c.bf16 %v780, %v777
        %v850 = vpack.c.bf16 %v788, %v785
        %v851 = vpack.c.bf16 %v796, %v793
        %v852 = vpack.c.bf16 %v804, %v801
        %v853 = vpack.c.bf16 %v812, %v809
        %v854 = vpack.c.bf16 %v820, %v817
        %v887 = vunpack.c.l.b16 %v823
        %v888 = vunpack.c.h.b16 %v823
        %v889 = vunpack.c.l.b16 %v824
        %v890 = vunpack.c.h.b16 %v824
        %v891 = vunpack.c.l.b16 %v825
        %v892 = vunpack.c.h.b16 %v825
        %v893 = vunpack.c.l.b16 %v826
        %v894 = vunpack.c.h.b16 %v826
        %v895 = vunpack.c.l.b16 %v827
        %v896 = vunpack.c.h.b16 %v827
        %v897 = vunpack.c.l.b16 %v828
        %v898 = vunpack.c.h.b16 %v828
        %v899 = vunpack.c.l.b16 %v829
        %v900 = vunpack.c.h.b16 %v829
        %v901 = vunpack.c.l.b16 %v830
        %v902 = vunpack.c.h.b16 %v830
        %v903 = vunpack.c.l.b16 %v831
        %v904 = vunpack.c.h.b16 %v831
        %v905 = vunpack.c.l.b16 %v832
        %v906 = vunpack.c.h.b16 %v832
        %v907 = vunpack.c.l.b16 %v833
        %v908 = vunpack.c.h.b16 %v833
        %v909 = vunpack.c.l.b16 %v834
        %v910 = vunpack.c.h.b16 %v834
        %v911 = vunpack.c.l.b16 %v835
        %v912 = vunpack.c.h.b16 %v835
        %v913 = vunpack.c.l.b16 %v836
        %v914 = vunpack.c.h.b16 %v836
        %v915 = vunpack.c.l.b16 %v837
        %v916 = vunpack.c.h.b16 %v837
        %v917 = vunpack.c.l.b16 %v838
        %v918 = vunpack.c.h.b16 %v838
        %v919 = vunpack.c.l.b16 %v839
        %v920 = vunpack.c.h.b16 %v839
        %v921 = vunpack.c.l.b16 %v840
        %v922 = vunpack.c.h.b16 %v840
        %v923 = vunpack.c.l.b16 %v841
        %v924 = vunpack.c.h.b16 %v841
        %v925 = vunpack.c.l.b16 %v842
        %v926 = vunpack.c.h.b16 %v842
        %v927 = vunpack.c.l.b16 %v843
        %v928 = vunpack.c.h.b16 %v843
        %v929 = vunpack.c.l.b16 %v844
        %v930 = vunpack.c.h.b16 %v844
        %v931 = vunpack.c.l.b16 %v845
        %v932 = vunpack.c.h.b16 %v845
        %v933 = vunpack.c.l.b16 %v846
        %v934 = vunpack.c.h.b16 %v846
        %v935 = vunpack.c.l.b16 %v847
        %v936 = vunpack.c.h.b16 %v847
        %v937 = vunpack.c.l.b16 %v848
        %v938 = vunpack.c.h.b16 %v848
        %v939 = vunpack.c.l.b16 %v849
        %v940 = vunpack.c.h.b16 %v849
        %v941 = vunpack.c.l.b16 %v850
        %v942 = vunpack.c.h.b16 %v850
        %v943 = vunpack.c.l.b16 %v851
        %v944 = vunpack.c.h.b16 %v851
        %v945 = vunpack.c.l.b16 %v852
        %v946 = vunpack.c.h.b16 %v852
        %v947 = vunpack.c.l.b16 %v853
        %v948 = vunpack.c.h.b16 %v853
        %v949 = vunpack.c.l.b16 %v854
        %v950 = vunpack.c.h.b16 %v854
        %v951 = vpack.c.b16 %v887, %v887
        %v952 = vpack.c.b16 %v888, %v888
        %v953 = vpack.c.b16 %v889, %v889
        %v954 = vpack.c.b16 %v890, %v890
        %v955 = vpack.c.b16 %v891, %v891
        %v956 = vpack.c.b16 %v892, %v892
        %v957 = vpack.c.b16 %v893, %v893
        %v958 = vpack.c.b16 %v894, %v894
        %v959 = vpack.c.b16 %v895, %v895
        %v960 = vpack.c.b16 %v896, %v896
        %v961 = vpack.c.b16 %v897, %v897
        %v962 = vpack.c.b16 %v898, %v898
        %v963 = vpack.c.b16 %v899, %v899
        %v964 = vpack.c.b16 %v900, %v900
        %v965 = vpack.c.b16 %v901, %v901
        %v966 = vpack.c.b16 %v902, %v902
        %v967 = vpack.c.b16 %v903, %v903
        %v968 = vpack.c.b16 %v904, %v904
        %v969 = vpack.c.b16 %v905, %v905
        %v970 = vpack.c.b16 %v906, %v906
        %v971 = vpack.c.b16 %v907, %v907
        %v972 = vpack.c.b16 %v908, %v908
        %v973 = vpack.c.b16 %v909, %v909
        %v974 = vpack.c.b16 %v910, %v910
        %v975 = vpack.c.b16 %v911, %v911
        %v976 = vpack.c.b16 %v912, %v912
        %v977 = vpack.c.b16 %v913, %v913
        %v978 = vpack.c.b16 %v914, %v914
        %v979 = vpack.c.b16 %v915, %v915
        %v980 = vpack.c.b16 %v916, %v916
        %v981 = vpack.c.b16 %v917, %v917
        %v982 = vpack.c.b16 %v918, %v918
        %v983 = vpack.c.b16 %v919, %v919
        %v984 = vpack.c.b16 %v920, %v920
        %v985 = vpack.c.b16 %v921, %v921
        %v986 = vpack.c.b16 %v922, %v922
        %v987 = vpack.c.b16 %v923, %v923
        %v988 = vpack.c.b16 %v924, %v924
        %v989 = vpack.c.b16 %v925, %v925
        %v990 = vpack.c.b16 %v926, %v926
        %v991 = vpack.c.b16 %v927, %v927
        %v992 = vpack.c.b16 %v928, %v928
        %v993 = vpack.c.b16 %v929, %v929
        %v994 = vpack.c.b16 %v930, %v930
        %v995 = vpack.c.b16 %v931, %v931
        %v996 = vpack.c.b16 %v932, %v932
        %v997 = vpack.c.b16 %v933, %v933
        %v998 = vpack.c.b16 %v934, %v934
        %v999 = vpack.c.b16 %v935, %v935
        %v1000 = vpack.c.b16 %v936, %v936
        %v1001 = vpack.c.b16 %v937, %v937
        %v1002 = vpack.c.b16 %v938, %v938
        %v1003 = vpack.c.b16 %v939, %v939
        %v1004 = vpack.c.b16 %v940, %v940
        %v1005 = vpack.c.b16 %v941, %v941
        %v1006 = vpack.c.b16 %v942, %v942
        %v1007 = vpack.c.b16 %v943, %v943
        %v1008 = vpack.c.b16 %v944, %v944
        %v1009 = vpack.c.b16 %v945, %v945
        %v1010 = vpack.c.b16 %v946, %v946
        %v1011 = vpack.c.b16 %v947, %v947
        %v1012 = vpack.c.b16 %v948, %v948
        %v1013 = vpack.c.b16 %v949, %v949
        %v1014 = vpack.c.b16 %v950, %v950
        %1079 = vst [vmem:[%s203] sm:$0xf] %v951
        %1080 = vst [vmem:[%s203 + $0x4] sm:$0xf] %v952
        %1081 = vst [vmem:[%s203 + $0x8] sm:$0xf] %v953
        %1082 = vst [vmem:[%s203 + $0xc] sm:$0xf] %v954
        %1083 = vst [vmem:[%s203 + $0x10] sm:$0xf] %v955
        %1084 = vst [vmem:[%s203 + $0x14] sm:$0xf] %v956
        %1085 = vst [vmem:[%s203 + $0x18] sm:$0xf] %v957
        %1086 = vst [vmem:[%s203 + $0x1c] sm:$0xf] %v958
        %1087 = vst [vmem:[%s203 + $0x20] sm:$0xf] %v959
        %1088 = vst [vmem:[%s203 + $0x24] sm:$0xf] %v960
        %1089 = vst [vmem:[%s203 + $0x28] sm:$0xf] %v961
        %1090 = vst [vmem:[%s203 + $0x2c] sm:$0xf] %v962
        %1091 = vst [vmem:[%s203 + $0x30] sm:$0xf] %v963
        %1092 = vst [vmem:[%s203 + $0x34] sm:$0xf] %v964
        %1093 = vst [vmem:[%s203 + $0x38] sm:$0xf] %v965
        %1094 = vst [vmem:[%s203 + $0x3c] sm:$0xf] %v966
        %1095 = vst [vmem:[%s203 + $0x40] sm:$0xf] %v967
        %1096 = vst [vmem:[%s203 + $0x44] sm:$0xf] %v968
        %1097 = vst [vmem:[%s203 + $0x48] sm:$0xf] %v969
        %1098 = vst [vmem:[%s203 + $0x4c] sm:$0xf] %v970
        %1099 = vst [vmem:[%s203 + $0x50] sm:$0xf] %v971
        %1100 = vst [vmem:[%s203 + $0x54] sm:$0xf] %v972
        %1101 = vst [vmem:[%s203 + $0x58] sm:$0xf] %v973
        %1102 = vst [vmem:[%s203 + $0x5c] sm:$0xf] %v974
        %1103 = vst [vmem:[%s203 + $0x60] sm:$0xf] %v975
        %1104 = vst [vmem:[%s203 + $0x64] sm:$0xf] %v976
        %1105 = vst [vmem:[%s203 + $0x68] sm:$0xf] %v977
        %1106 = vst [vmem:[%s203 + $0x6c] sm:$0xf] %v978
        %1107 = vst [vmem:[%s203 + $0x70] sm:$0xf] %v979
        %1108 = vst [vmem:[%s203 + $0x74] sm:$0xf] %v980
        %1109 = vst [vmem:[%s203 + $0x78] sm:$0xf] %v981
        %1110 = vst [vmem:[%s203 + $0x7c] sm:$0xf] %v982
        %1111 = vst [vmem:[%s203 + $0x80] sm:$0xf] %v983
        %1112 = vst [vmem:[%s203 + $0x84] sm:$0xf] %v984
        %1113 = vst [vmem:[%s203 + $0x88] sm:$0xf] %v985
        %1114 = vst [vmem:[%s203 + $0x8c] sm:$0xf] %v986
        %1115 = vst [vmem:[%s203 + $0x90] sm:$0xf] %v987
        %1116 = vst [vmem:[%s203 + $0x94] sm:$0xf] %v988
        %1117 = vst [vmem:[%s203 + $0x98] sm:$0xf] %v989
        %1118 = vst [vmem:[%s203 + $0x9c] sm:$0xf] %v990
        %1119 = vst [vmem:[%s203 + $0xa0] sm:$0xf] %v991
        %1120 = vst [vmem:[%s203 + $0xa4] sm:$0xf] %v992
        %1121 = vst [vmem:[%s203 + $0xa8] sm:$0xf] %v993
        %1122 = vst [vmem:[%s203 + $0xac] sm:$0xf] %v994
        %1123 = vst [vmem:[%s203 + $0xb0] sm:$0xf] %v995
        %1124 = vst [vmem:[%s203 + $0xb4] sm:$0xf] %v996
        %1125 = vst [vmem:[%s203 + $0xb8] sm:$0xf] %v997
        %1126 = vst [vmem:[%s203 + $0xbc] sm:$0xf] %v998
        %1127 = vst [vmem:[%s203 + $0xc0] sm:$0xf] %v999
        %1128 = vst [vmem:[%s203 + $0xc4] sm:$0xf] %v1000
        %1129 = vst [vmem:[%s203 + $0xc8] sm:$0xf] %v1001
        %1130 = vst [vmem:[%s203 + $0xcc] sm:$0xf] %v1002
        %1131 = vst [vmem:[%s203 + $0xd0] sm:$0xf] %v1003
        %1132 = vst [vmem:[%s203 + $0xd4] sm:$0xf] %v1004
        %1133 = vst [vmem:[%s203 + $0xd8] sm:$0xf] %v1005
        %1134 = vst [vmem:[%s203 + $0xdc] sm:$0xf] %v1006
        %1135 = vst [vmem:[%s203 + $0xe0] sm:$0xf] %v1007
        %1136 = vst [vmem:[%s203 + $0xe4] sm:$0xf] %v1008
        %1137 = vst [vmem:[%s203 + $0xe8] sm:$0xf] %v1009
        %1138 = vst [vmem:[%s203 + $0xec] sm:$0xf] %v1010
        %1139 = vst [vmem:[%s203 + $0xf0] sm:$0xf] %v1011
        %1140 = vst [vmem:[%s203 + $0xf4] sm:$0xf] %v1012
        %1141 = vst [vmem:[%s203 + $0xf8] sm:$0xf] %v1013
        %1142 = vst [vmem:[%s203 + $0xfc] sm:$0xf] %v1014
        %s1143 = sand.u32 %s97, 1
        %s1144 = scalar_lea.sflag [#allocation4], %s1143
        %s1145 = sand.u32 %s97, 1
        %s1146 = smul.addr %s1145, 256
        %s1147 = scalar_lea.vmem [#allocation7], %s1146
        // Predicated region
        $region41: #{tpu_custom_call.1} parent=31 // pred_check
          %p1148 = pneg %p107
        $region42: #{tpu_custom_call.1} parent=31 // pred_check_branch
          %1150 = sbr.rel (%p1148) target = $region44
        $region43: #{tpu_custom_call.1} parent=31 // pred_region
          %s1151 = smul.u32 64, %s21
          %s1153 = ssub.s32 4096, 4096
          %1154 = vsyncadd %s1144, %s1153
          %s1155 = smul.addr %s1151, 64
          %s1156 = scalar_lea.hbm %s3, %s1155
          %s1157 = sshll.u32 %s1147, 4
          %s1158 = int_to_ptr.vmem [resolvable:$true] %s1157
          %1163 = dma.vmem_to_hbm [thread:$0]  %s1158, 4096, %s1156, %s1144, 64, 64, 4
        $region44: #{tpu_custom_call.1} parent=31 // pred_fallthru
          _
      $region32: #{tpu_custom_call.1} parent=5 // pred_fallthru
        _
      %p1164 = scmp.le.s32.totalorder 2, %s16
      // Predicated region
      $region45: #{tpu_custom_call.1} parent=5 // pred_check
        %p1165 = pneg %p1164
      $region46: #{tpu_custom_call.1} parent=5 // pred_check_branch
        %1167 = sbr.rel (%p1165) target = $region48
      $region47: #{tpu_custom_call.1} parent=5 // pred_region
        %s1168 = ssub.s32 %s16, 2
        // Predicated region
        $region49: #{tpu_custom_call.1} parent=47 // pred_check
          %p1169 = pneg %p113
        $region50: #{tpu_custom_call.1} parent=47 // pred_check_branch
          %1171 = sbr.rel (%p1169) target = $region52
        $region51: #{tpu_custom_call.1} parent=47 // pred_region
          %s1172 = sand.u32 %s98, 1
          %s1173 = scalar_lea.sflag [#allocation4], %s1172
          %s1174 = sand.u32 %s98, 1
          %s1175 = smul.addr %s1174, 256
          %s1176 = scalar_lea.vmem [#allocation7], %s1175
          %1177 = dma.done %s1173, 4096
        $region52: #{tpu_custom_call.1} parent=47 // pred_fallthru
          _
      $region48: #{tpu_custom_call.1} parent=5 // pred_fallthru
        _
    $region6: #{tpu_custom_call.1} parent=1 // loop_footer
      %s20 = sadd.s32 1, %s16
    $region7: #{tpu_custom_call.1} parent=1 // loop_footer_branch
      %15 = sbr.rel target = $region3
    $region8: #{tpu_custom_call.1} parent=1 // loop_exit
      _
    %1178 = vsyncpa [#allocation3], 1
    %s1179 = scalar_lea.sflag [#allocation3], 1
    %1180 = vsyncpa %s1179, 1
    %1181 = vsyncpa [#allocation6], 1
    %1182 = vsyncpa [#allocation4], 1
    %s1183 = scalar_lea.sflag [#allocation4], 1
    %1184 = vsyncpa %s1183, 1

</llo_original>
